<compile_context>
chip_gen: v6e
topology: v6e:2x2x1
jax: 0.10.0
libtpu: 0.0.40
codegen_flags: <defaults>
</compile_context>

<pallas_src>
import functools

import numpy as np
import jax
import jax.numpy as jnp
from jax.experimental import pallas as pl
from jax.experimental.pallas import tpu as pltpu


# --------------------------------------------------------------------------- #
# Kernel
# --------------------------------------------------------------------------- #
def masked_linear_kernel(x_ref, wt_ref, b_ref, o_ref, acc_ref):
    """One (i, j, k) grid step of y = x @ W_masked.T + b.

    x_ref:  (tm, tk)  compute dtype
    wt_ref: (tk, tn)  compute dtype (pre-masked, pre-transposed weight)
    b_ref:  (1,  tn)  float32 bias
    o_ref:  (tm, tn)  output dtype
    acc_ref:(tm, tn)  float32 VMEM accumulator (lives across the K axis)
    """

    # k == 0: seed the accumulator with the broadcast bias (drops the VPU add
    # from the finalize step).
    @pl.when(pl.program_id(2) == 0)
    def _init():
        acc_ref[...] = jnp.broadcast_to(
            b_ref[...].astype(jnp.float32), acc_ref.shape
        )

    acc_ref[...] += jnp.dot(
        x_ref[...], wt_ref[...], preferred_element_type=jnp.float32
    )

    # k == last: cast + store (lane-dense, unmasked vst since tn % 128 == 0).
    @pl.when(pl.program_id(2) == pl.num_programs(2) - 1)
    def _finalize():
        o_ref[...] = acc_ref[...].astype(o_ref.dtype)


# --------------------------------------------------------------------------- #
# Tiling helpers
# --------------------------------------------------------------------------- #
def _round_up(x, m):
    return ((x + m - 1) // m) * m


def _choose_tile(dim, pref, align):
    """Aligned tile size (<= pref when possible) and the padded dim it divides."""
    padded = _round_up(dim, align)
    if padded <= pref:
        return padded, padded          # single tile covers the whole (padded) dim
    tile = _round_up(pref, align)
    padded = _round_up(padded, tile)
    return tile, padded


def _choose_tile_parallel(dim, pref, align=128):
    """Like _choose_tile, but prefer >= 2 blocks along this 'parallel' axis so
    both v7x TensorCores get work even for single-M-tile (small batch) calls."""
    tile, padded = _choose_tile(dim, pref, align)
    if padded // tile < 2 and padded >= 2 * align and padded % (2 * align) == 0:
        tile = padded // 2
    return tile, padded


# --------------------------------------------------------------------------- #
# One-time preparation (mirrors the PyTorch __init__ masking)
# --------------------------------------------------------------------------- #
def prepare_masked_linear(
    weight,
    bias,
    indices_mask,
    *,
    compute_dtype=jnp.bfloat16,
    tm_pref=512,
    tn_pref=512,
    tk_pref=512,
):
    """Mask, transpose, cast and pad the weight/bias ONCE.

    weight: (out_dim, in_dim); bias: (out_dim,); indices_mask: bool (out_dim, in_dim).
    Returns a params dict consumed by masked_linear_apply.
    """
    out_dim, in_dim = weight.shape
    assert indices_mask.shape == weight.shape

    # Mirrors `self.linear.weight.data[indices_mask] = 0`.
    w_masked = jnp.where(indices_mask, jnp.zeros((), weight.dtype), weight)
    w_t = w_masked.T.astype(compute_dtype)  # (in_dim, out_dim)

    tk, k_pad = _choose_tile(in_dim, tk_pref, 128)
    tn, n_pad = _choose_tile_parallel(out_dim, tn_pref, 128)

    if (k_pad, n_pad) != (in_dim, out_dim):
        w_t = jnp.pad(w_t, ((0, k_pad - in_dim), (0, n_pad - out_dim)))

    b2 = bias.astype(jnp.float32).reshape(1, out_dim)
    if n_pad != out_dim:
        b2 = jnp.pad(b2, ((0, 0), (0, n_pad - out_dim)))

    return dict(
        w_t=jax.block_until_ready(w_t),
        b2=jax.block_until_ready(b2),
        out_dim=out_dim,
        in_dim=in_dim,
        tn=tn,
        tk=tk,
        tm_pref=tm_pref,
        compute_dtype=compute_dtype,
    )


# --------------------------------------------------------------------------- #
# Per-call apply
# --------------------------------------------------------------------------- #
@functools.partial(
    jax.jit,
    static_argnames=("out_dim", "in_dim", "tn", "tk", "tm_pref", "compute_dtype"),
)
def _masked_linear_call(x, w_t, b2, *, out_dim, in_dim, tn, tk, tm_pref, compute_dtype):
    out_dtype = x.dtype
    B, K = x.shape
    assert K == in_dim, (K, in_dim)
    k_pad, n_pad = w_t.shape

    x = x.astype(compute_dtype)
    cb = np.dtype(compute_dtype).itemsize
    ob = np.dtype(out_dtype).itemsize

    # Sublane alignment for packed dtypes: 8 (f32), 16 (bf16), 32 (int8/fp8).
    sub_align = max(8, 32 // cb)
    tm, m_pad = _choose_tile(B, tm_pref, sub_align)

    # Zero-pad x (zeros are inert for the matmul; padded rows sliced off below).
    if (m_pad, k_pad) != (B, K):
        x = jnp.pad(x, ((0, m_pad - B), (0, k_pad - K)))

    grid = (m_pad // tm, n_pad // tn, k_pad // tk)

    # Explicit VMEM budget: double-buffered input/output tiles + f32 accumulator,
    # plus headroom; capped below v7x's 64 MiB physical VMEM.
    vmem_bytes = (
        2 * (tm * tk + tk * tn) * cb  # double-buffered x / W_T tiles
        + 2 * tn * 4                  # bias tile (f32)
        + 2 * tm * tn * ob            # double-buffered output tile
        + tm * tn * 4                 # f32 accumulator scratch
    )
    vmem_limit = int(min(max(vmem_bytes + (8 << 20), 32 << 20), 48 << 20))

    cost = pl.CostEstimate(
        flops=2 * m_pad * k_pad * n_pad,
        transcendentals=0,
        bytes_accessed=(
            m_pad * k_pad * cb + k_pad * n_pad * cb + n_pad * 4 + m_pad * n_pad * ob
        ),
    )

    out = pl.pallas_call(
        masked_linear_kernel,
        out_shape=jax.ShapeDtypeStruct((m_pad, n_pad), out_dtype),
        grid_spec=pltpu.PrefetchScalarGridSpec(
            num_scalar_prefetch=0,
            grid=grid,
            in_specs=[
                pl.BlockSpec((tm, tk), lambda i, j, k: (i, k)),
                pl.BlockSpec((tk, tn), lambda i, j, k: (k, j)),
                pl.BlockSpec((1, tn), lambda i, j, k: (0, j)),
            ],
            out_specs=pl.BlockSpec((tm, tn), lambda i, j, k: (i, j)),
            scratch_shapes=[pltpu.VMEM((tm, tn), jnp.float32)],
        ),
        compiler_params=pltpu.CompilerParams(
            dimension_semantics=("parallel", "parallel", "arbitrary"),
            vmem_limit_bytes=vmem_limit,
        ),
        cost_estimate=cost,
    )(x, w_t, b2)

    return out[:B, :out_dim]


def masked_linear_apply(x, params):
    """x: (B, in_dim) -> (B, out_dim), using one-time-prepared params."""
    return _masked_linear_call(
        x,
        params["w_t"],
        params["b2"],
        out_dim=params["out_dim"],
        in_dim=params["in_dim"],
        tn=params["tn"],
        tk=params["tk"],
        tm_pref=params["tm_pref"],
        compute_dtype=params["compute_dtype"],
    )


def masked_linear(x, weight, bias, indices_mask, **prep_kwargs):
    """Convenience one-shot wrapper.  For repeated use, call
    prepare_masked_linear once and reuse its result with masked_linear_apply."""
    params = prepare_masked_linear(weight, bias, indices_mask, **prep_kwargs)
    return masked_linear_apply(x, params)


# --------------------------------------------------------------------------- #
# Demo / correctness check
# --------------------------------------------------------------------------- #
if __name__ == "__main__":
    # Small shapes consistent with nn.Linear(in_dim, out_dim) on (batch, in_dim).
    batch, in_dim, out_dim = 8, 32, 64

    key = jax.random.PRNGKey(0)
    kx, kw, kb = jax.random.split(key, 3)

    x = jax.random.normal(kx, (batch, in_dim), dtype=jnp.float32)
    bound = 1.0 / (in_dim ** 0.5)
    weight = jax.random.uniform(kw, (out_dim, in_dim), jnp.float32, -bound, bound)
    bias = jax.random.uniform(kb, (out_dim,), jnp.float32, -bound, bound)

    # Deterministic indices_mask (checkerboard): True entries are zeroed in W.
    rows = jnp.arange(out_dim)[:, None]
    cols = jnp.arange(in_dim)[None, :]
    indices_mask = ((rows + cols) % 2) == 0  # bool (out_dim, in_dim)

    # Plain-JAX reference.
    w_ref = jnp.where(indices_mask, 0.0, weight)
    y_ref = x @ w_ref.T + bias

    # 1) f32-compute path (bit-accurate check).
    params_f32 = prepare_masked_linear(
        weight, bias, indices_mask, compute_dtype=jnp.float32
    )
    y32 = jax.block_until_ready(masked_linear_apply(x, params_f32))
    assert y32.shape == (batch, out_dim)
    assert jnp.allclose(y32, y_ref, atol=1e-5, rtol=1e-5)

    # 2) Default bf16-MXU path (f32 accumulation; looser tolerance from the
    #    one-time bf16 rounding of x and W_T).
    params_bf16 = prepare_masked_linear(weight, bias, indices_mask)
    y16 = jax.block_until_ready(masked_linear_apply(x, params_bf16))
    assert y16.shape == (batch, out_dim)
    assert y16.dtype == x.dtype
    assert jnp.allclose(y16, y_ref, atol=3e-2, rtol=3e-2)

    print("KERNEL_OK")
</pallas_src>

<mosaic_0001>
module attributes {stable_mosaic.version = 11 : i64} {
  func.func @masked_linear_kernel(%arg0: i32, %arg1: i32, %arg2: i32, %arg3: memref<8x128xf32, #tpu.memory_space<vmem>>, %arg4: memref<128x128xf32, #tpu.memory_space<vmem>>, %arg5: memref<1x128xf32, #tpu.memory_space<vmem>>, %arg6: memref<8x128xf32, #tpu.memory_space<vmem>>, %arg7: memref<8x128xf32, #tpu.memory_space<vmem>>) attributes {dimension_semantics = [#tpu.dimension_semantics<parallel>, #tpu.dimension_semantics<parallel>, #tpu.dimension_semantics<arbitrary>], iteration_bounds = array<i64: 1, 1, 1>, scalar_prefetch = 0 : i64, scratch_operands = 1 : i64, tpu.core_type = #tpu.core_type<tc>, window_params = [{transform_indices = @transform_0, window_bounds = array<i64: 8, 128>}, {transform_indices = @transform_1, window_bounds = array<i64: 128, 128>}, {transform_indices = @transform_2, window_bounds = array<i64: 1, 128>}, {transform_indices = @transform_3, window_bounds = array<i64: 8, 128>}]} {
    %c0_i32 = arith.constant 0 : i32
    %0 = arith.cmpi eq, %arg2, %c0_i32 : i32
    %1 = arith.extui %0 : i1 to i32
    %c0_i32_0 = arith.constant 0 : i32
    %2 = arith.cmpi ne, %1, %c0_i32_0 : i32
    scf.if %2 {
      %c0_10 = arith.constant 0 : index
      %c0_11 = arith.constant 0 : index
      %12 = vector.load %arg5[%c0_10, %c0_11] : memref<1x128xf32, #tpu.memory_space<vmem>>, vector<1x128xf32>
      %13 = vector.shape_cast %12 : vector<1x128xf32> to vector<1x128xf32>
      %14 = vector.broadcast %13 : vector<1x128xf32> to vector<8x128xf32>
      %c0_12 = arith.constant 0 : index
      %c0_13 = arith.constant 0 : index
      %15 = vector.load %arg7[%c0_12, %c0_13] : memref<8x128xf32, #tpu.memory_space<vmem>>, vector<8x128xf32>
      tpu.vector_store %arg7[%c0_12, %c0_13], %14 {strides = array<i32>} : memref<8x128xf32, #tpu.memory_space<vmem>>, vector<8x128xf32>,
    } else {
    }
    %c0 = arith.constant 0 : index
    %c0_1 = arith.constant 0 : index
    %3 = vector.load %arg7[%c0, %c0_1] : memref<8x128xf32, #tpu.memory_space<vmem>>, vector<8x128xf32>
    %c0_2 = arith.constant 0 : index
    %c0_3 = arith.constant 0 : index
    %4 = vector.load %arg3[%c0_2, %c0_3] : memref<8x128xf32, #tpu.memory_space<vmem>>, vector<8x128xf32>
    %c0_4 = arith.constant 0 : index
    %c0_5 = arith.constant 0 : index
    %5 = vector.load %arg4[%c0_4, %c0_5] : memref<128x128xf32, #tpu.memory_space<vmem>>, vector<128x128xf32>
    %cst = arith.constant dense<0.000000e+00> : vector<8x128xf32>
    %6 = tpu.matmul %4, %5, %cst {dimension_numbers = #tpu.dot_dimension_numbers<[1], [0], [0], [1], [0, 0, 1, 1], [], []>} : vector<8x128xf32>, vector<128x128xf32>, vector<8x128xf32> -> vector<8x128xf32>
    %7 = arith.addf %3, %6 : vector<8x128xf32>
    %c0_6 = arith.constant 0 : index
    %c0_7 = arith.constant 0 : index
    %8 = vector.load %arg7[%c0_6, %c0_7] : memref<8x128xf32, #tpu.memory_space<vmem>>, vector<8x128xf32>
    tpu.vector_store %arg7[%c0_6, %c0_7], %7 {strides = array<i32>} : memref<8x128xf32, #tpu.memory_space<vmem>>, vector<8x128xf32>,
    %c0_i32_8 = arith.constant 0 : i32
    %9 = arith.cmpi eq, %arg2, %c0_i32_8 : i32
    %10 = arith.extui %9 : i1 to i32
    %c0_i32_9 = arith.constant 0 : i32
    %11 = arith.cmpi ne, %10, %c0_i32_9 : i32
    scf.if %11 {
      %c0_10 = arith.constant 0 : index
      %c0_11 = arith.constant 0 : index
      %12 = vector.load %arg7[%c0_10, %c0_11] : memref<8x128xf32, #tpu.memory_space<vmem>>, vector<8x128xf32>
      %c0_12 = arith.constant 0 : index
      %c0_13 = arith.constant 0 : index
      %13 = vector.load %arg6[%c0_12, %c0_13] : memref<8x128xf32, #tpu.memory_space<vmem>>, vector<8x128xf32>
      tpu.vector_store %arg6[%c0_12, %c0_13], %12 {strides = array<i32>} : memref<8x128xf32, #tpu.memory_space<vmem>>, vector<8x128xf32>,
    } else {
    }
    return
  }
  func.func @transform_0(%arg0: i32, %arg1: i32, %arg2: i32) -> (i32, i32) {
    %c0_i32 = arith.constant 0 : i32
    return %arg0, %arg2 : i32, i32
  }
  func.func @transform_1(%arg0: i32, %arg1: i32, %arg2: i32) -> (i32, i32) {
    %c0_i32 = arith.constant 0 : i32
    return %arg2, %arg1 : i32, i32
  }
  func.func @transform_2(%arg0: i32, %arg1: i32, %arg2: i32) -> (i32, i32) {
    %c0_i32 = arith.constant 0 : i32
    %c0_i32_0 = arith.constant 0 : i32
    return %c0_i32, %arg1 : i32, i32
  }
  func.func @transform_3(%arg0: i32, %arg1: i32, %arg2: i32) -> (i32, i32) {
    %c0_i32 = arith.constant 0 : i32
    return %arg0, %arg1 : i32, i32
  }
}

</mosaic_0001>

<llo_original>
// kernel: _masked_linear_call.1
$region0: #{_masked_linear_call.1}
  #allocation0 [shape = 'u32[]', space=smem, size = 0x4, offset = 0x4, fixed_abs, tag = 'smem constant byte address 0x4 - core index']
  #allocation1 [shape = 'u32[144,128]{1,0:T(1,128)}', space=vmem, size = 0x12000, scoped, tag = 'internal scratch']
  #allocation2 [shape = 'f32[8,128]{1,0:T(8,128)}', space=vmem, size = 0x1000, scoped, tag = 'scratch operand']
  %s0 = inlined_call_operand.vmem [shape: f32[8,128], index: 0, kind: input, shape index: {}]
  %s1 = inlined_call_operand.hbm [shape: f32[128,128], index: 1, kind: input, shape index: {}]
  %s2 = inlined_call_operand.vmem [shape: f32[1,128], index: 2, kind: input, shape index: {}]
  %s3 = inlined_call_operand.hbm [shape: f32[8,128], index: 3, kind: output, shape index: {}]
  %s4 = sld [smem:[#allocation0]]
  $region34: #{_masked_linear_call.1} parent=0
    _
  %s6 = ssub.s32 1, %s4
  %s7 = scalar_select 0, %s6, %s4
  $region1: #{_masked_linear_call.1} parent=0
    #allocation3 [shape = 'u8[65536]{0}', space=vmem, size = 0x10000, scoped, tag = 'input window, operand 1, single buffered']
    #allocation4 [shape = 's32[1]{0}', space=sflag, size = 0x4, scoped, tag = 'scoped memory for _masked_linear_call.1']
    #allocation5 [shape = 's32[1]{0}', space=sflag, size = 0x4, scoped, tag = 'scoped memory for _masked_linear_call.1']
    #allocation6 [shape = 'u8[4096]{0}', space=vmem, size = 0x1000, scoped, tag = 'output window, operand 0, single buffered']
    %8 = vsyncpa [#allocation4], 0
    %9 = vsyncpa [#allocation5], 0
    // Predicated region
    $region2: #{_masked_linear_call.1} parent=1 // pred_check
      _
    $region3: #{_masked_linear_call.1} parent=1 // pred_check_branch
      %11 = sbr.rel (0) target = $region5
    $region4: #{_masked_linear_call.1} parent=1 // pred_region
      _
    $region5: #{_masked_linear_call.1} parent=1 // pred_fallthru
      _
    // Predicated region
    $region6: #{_masked_linear_call.1} parent=1 // pred_check
      _
    $region7: #{_masked_linear_call.1} parent=1 // pred_check_branch
      %13 = sbr.rel (0) target = $region9
    $region8: #{_masked_linear_call.1} parent=1 // pred_region
      %s15 = ssub.s32 2048, 2048
      %16 = vsyncadd [#allocation4], %s15
      %s17 = sshll.u32 [#allocation3], 4
      %s18 = int_to_ptr.vmem [resolvable:$true] %s17
      %23 = dma.hbm_to_vmem [thread:$0]  %s1, 2048, %s18, [#allocation4], 128, 128, 8
    $region9: #{_masked_linear_call.1} parent=1 // pred_fallthru
      _
    // Predicated region
    $region10: #{_masked_linear_call.1} parent=1 // pred_check
      _
    $region11: #{_masked_linear_call.1} parent=1 // pred_check_branch
      %25 = sbr.rel (0) target = $region13
    $region12: #{_masked_linear_call.1} parent=1 // pred_region
      _
    $region13: #{_masked_linear_call.1} parent=1 // pred_fallthru
      _
    // Predicated region
    $region14: #{_masked_linear_call.1} parent=1 // pred_check
      _
    $region15: #{_masked_linear_call.1} parent=1 // pred_check_branch
      %27 = sbr.rel (0) target = $region17
    $region16: #{_masked_linear_call.1} parent=1 // pred_region
      %28 = dma.done [#allocation4], 2048
    $region17: #{_masked_linear_call.1} parent=1 // pred_fallthru
      _
    %p29 = scmp.eq.s32.totalorder 0, 0
    // Predicated region
    $region18: #{_masked_linear_call.1} parent=1 // pred_check
      %p30 = pneg %p29
    $region19: #{_masked_linear_call.1} parent=1 // pred_check_branch
      %32 = sbr.rel (%p30) target = $region21
    $region20: #{_masked_linear_call.1} parent=1 // pred_region
      %v33 = vld [vmem:[%s2] sm:$0x1]
      %v35 = vlaneseq
      %v36 = vshrl.u32 %v35, 7
      %v37 = vsub.s32 0, %v36
      %v38 = vrot.slane %v33, %v37
      %40 = vst [vmem:[#allocation2] sm:$0xff] %v38
    $region21: #{_masked_linear_call.1} parent=1 // pred_fallthru
      _
    %v41 = vld [vmem:[#allocation2] sm:$0xff]
    %v42 = vld [vmem:[%s0] sm:$0xff]
    %v43 = vld [vmem:[#allocation3] sm:$0xff]
    %v44 = vld [vmem:[#allocation3 + $0x8] sm:$0xff]
    %v45 = vld [vmem:[#allocation3 + $0x10] sm:$0xff]
    %v46 = vld [vmem:[#allocation3 + $0x18] sm:$0xff]
    %v47 = vld [vmem:[#allocation3 + $0x20] sm:$0xff]
    %v48 = vld [vmem:[#allocation3 + $0x28] sm:$0xff]
    %v49 = vld [vmem:[#allocation3 + $0x30] sm:$0xff]
    %v50 = vld [vmem:[#allocation3 + $0x38] sm:$0xff]
    %v51 = vld [vmem:[#allocation3 + $0x40] sm:$0xff]
    %v52 = vld [vmem:[#allocation3 + $0x48] sm:$0xff]
    %v53 = vld [vmem:[#allocation3 + $0x50] sm:$0xff]
    %v54 = vld [vmem:[#allocation3 + $0x58] sm:$0xff]
    %v55 = vld [vmem:[#allocation3 + $0x60] sm:$0xff]
    %v56 = vld [vmem:[#allocation3 + $0x68] sm:$0xff]
    %v57 = vld [vmem:[#allocation3 + $0x70] sm:$0xff]
    %v58 = vld [vmem:[#allocation3 + $0x78] sm:$0xff]
    %59 = vmatprep.subr.mxu0 0.0
    %60 = vmatpush1.msra.mxu0 %v58
    %61 = vmatprep.subr.mxu0 0.0
    %62 = vmatpush1.msra.mxu0 %v57
    %63 = vmatprep.subr.mxu0 0.0
    %64 = vmatpush1.msra.mxu0 %v56
    %65 = vmatprep.subr.mxu0 0.0
    %66 = vmatpush1.msra.mxu0 %v55
    %67 = vmatprep.subr.mxu0 0.0
    %68 = vmatpush1.msra.mxu0 %v54
    %69 = vmatprep.subr.mxu0 0.0
    %70 = vmatpush1.msra.mxu0 %v53
    %71 = vmatprep.subr.mxu0 0.0
    %72 = vmatpush1.msra.mxu0 %v52
    %73 = vmatprep.subr.mxu0 0.0
    %74 = vmatpush1.msra.mxu0 %v51
    %75 = vmatprep.subr.mxu0 0.0
    %76 = vmatpush1.msra.mxu0 %v50
    %77 = vmatprep.subr.mxu0 0.0
    %78 = vmatpush1.msra.mxu0 %v49
    %79 = vmatprep.subr.mxu0 0.0
    %80 = vmatpush1.msra.mxu0 %v48
    %81 = vmatprep.subr.mxu0 0.0
    %82 = vmatpush1.msra.mxu0 %v47
    %83 = vmatprep.subr.mxu0 0.0
    %84 = vmatpush1.msra.mxu0 %v46
    %85 = vmatprep.subr.mxu0 0.0
    %86 = vmatpush1.msra.mxu0 %v45
    %87 = vmatprep.subr.mxu0 0.0
    %88 = vmatpush1.msra.mxu0 %v44
    %89 = vmatprep.subr.mxu0 0.0
    %90 = vmatpush1.msra.mxu0 %v43
    %91 = vmatprep.subr.mxu0 0.0
    %92 = vmatpush2.msra.mxu0 0.0
    %93 = vmatprep.subr.mxu0 0.0
    %94 = vmatpush2.msra.mxu0 0.0
    %95 = vmatprep.subr.mxu0 0.0
    %96 = vmatpush2.msra.mxu0 0.0
    %97 = vmatprep.subr.mxu0 0.0
    %98 = vmatpush2.msra.mxu0 0.0
    %99 = vmatprep.subr.mxu0 0.0
    %100 = vmatpush2.msra.mxu0 0.0
    %101 = vmatprep.subr.mxu0 0.0
    %102 = vmatpush2.msra.mxu0 0.0
    %103 = vmatprep.subr.mxu0 0.0
    %104 = vmatpush2.msra.mxu0 0.0
    %105 = vmatprep.subr.mxu0 0.0
    %106 = vmatpush2.msra.mxu0 0.0
    %107 = vmatprep.subr.mxu0 0.0
    %108 = vmatpush2.msra.mxu0 0.0
    %109 = vmatprep.subr.mxu0 0.0
    %110 = vmatpush2.msra.mxu0 0.0
    %111 = vmatprep.subr.mxu0 0.0
    %112 = vmatpush2.msra.mxu0 0.0
    %113 = vmatprep.subr.mxu0 0.0
    %114 = vmatpush2.msra.mxu0 0.0
    %115 = vmatprep.subr.mxu0 0.0
    %116 = vmatpush2.msra.mxu0 0.0
    %117 = vmatprep.subr.mxu0 0.0
    %118 = vmatpush2.msra.mxu0 0.0
    %119 = vmatprep.subr.mxu0 0.0
    %120 = vmatpush2.msra.mxu0 0.0
    %121 = vmatprep.subr.mxu0 0.0
    %122 = vmatpush2.msra.mxu0 0.0
    %123 = vmatprep.mubr.f32.mxu0 0.0
    %124 = vmatmul.mubr.f32.gmra.mxu0 %v42
    %v125 = vpop.f32.mrf.mxu0
    %v126 = vadd.f32 0.0, %v125
    %v127 = vpop.f32.mrf.mxu0
    %128 = vdwg.mxu0
    %v129 = vadd.f32 %v41, %v126
    %130 = vst [vmem:[#allocation2] sm:$0xff] %v129
    // Predicated region
    $region22: #{_masked_linear_call.1} parent=1 // pred_check
      %p131 = pneg %p29
    $region23: #{_masked_linear_call.1} parent=1 // pred_check_branch
      %133 = sbr.rel (%p131) target = $region25
    $region24: #{_masked_linear_call.1} parent=1 // pred_region
      %v134 = vld [vmem:[#allocation2] sm:$0xff]
      %135 = vst [vmem:[#allocation6] sm:$0xff] %v134
    $region25: #{_masked_linear_call.1} parent=1 // pred_fallthru
      _
    // Predicated region
    $region26: #{_masked_linear_call.1} parent=1 // pred_check
      _
    $region27: #{_masked_linear_call.1} parent=1 // pred_check_branch
      %137 = sbr.rel (0) target = $region29
    $region28: #{_masked_linear_call.1} parent=1 // pred_region
      %s139 = ssub.s32 128, 128
      %140 = vsyncadd [#allocation5], %s139
      %s142 = sshll.u32 [#allocation6], 4
      %s143 = int_to_ptr.vmem [resolvable:$true] %s142
      %145 = dma.vmem_to_hbm [thread:$0]  %s143, 128, %s3, [#allocation5]
    $region29: #{_masked_linear_call.1} parent=1 // pred_fallthru
      _
    // Predicated region
    $region30: #{_masked_linear_call.1} parent=1 // pred_check
      _
    $region31: #{_masked_linear_call.1} parent=1 // pred_check_branch
      %147 = sbr.rel (0) target = $region33
    $region32: #{_masked_linear_call.1} parent=1 // pred_region
      %148 = dma.done [#allocation5], 128
    $region33: #{_masked_linear_call.1} parent=1 // pred_fallthru
      _
    %149 = vsyncpa [#allocation4], 1
    %150 = vsyncpa [#allocation5], 1

</llo_original>
